<compile_context>
chip_gen: v5e
topology: v5e:2x2
jax: 0.10.0
libtpu: 0.0.40
codegen_flags: <defaults>
</compile_context>

<pallas_src>
import jax
import jax.numpy as jnp
from jax import lax
from jax.experimental import pallas as pl
from jax.experimental.pallas import tpu as pltpu

_EPS = 1e-8
_LANE = 128


def _minibatch_stddev_kernel(x_ref, o_ref):
    # x_ref: (N, C, T), o_ref: (N, C+1, T) — T lanes of the flattened HW axis.
    n, c, t = x_ref.shape          # static Python ints (block shape)
    inv_n = 1.0 / n

    # Pass 1: stream one batch slice at a time, write the pass-through rows as
    # we go, and accumulate the f32 batch sum. Live set: one (C, T) slice + one
    # f32 (C, T) accumulator.
    def pass1(i, s):
        xi = x_ref[i]                               # (C, T), input dtype
        o_ref[i, pl.ds(0, c), :] = xi               # pass-through channels
        return s + xi.astype(jnp.float32)

    ssum = lax.fori_loop(0, n, pass1, jnp.zeros((c, t), jnp.float32),
                         unroll=True)
    mean = ssum * inv_n                             # (C, T) f32

    # Pass 2: exact two-pass variance sum((x - mean)^2). The block is already
    # VMEM-resident, so the second read costs no extra HBM traffic and matches
    # PyTorch numerics on non-zero-mean activations.
    def pass2(i, s):
        d = x_ref[i].astype(jnp.float32) - mean
        return s + d * d

    sq = lax.fori_loop(0, n, pass2, jnp.zeros((c, t), jnp.float32),
                       unroll=True)
    std = jnp.sqrt(sq * inv_n + _EPS)               # (C, T)

    # averaging == 'all': mean over channels -> one std feature value per pixel.
    vals = jnp.mean(std, axis=0)[None, :].astype(o_ref.dtype)   # (1, T)

    # Pass 3: extra channel, broadcast across the batch without materializing
    # an (N, T) array.
    def pass3(i, carry):
        o_ref[i, pl.ds(c, 1), :] = vals
        return carry

    lax.fori_loop(0, n, pass3, 0, unroll=True)


def _vmem_budgets():
    """Generation-aware (tile_budget_bytes, vmem_limit_bytes)."""
    cap = None
    try:
        info = pltpu.get_tpu_info()
        for name in ("vmem_capacity_bytes", "vmem_bytes", "vmem_size_bytes"):
            v = getattr(info, name, None)
            if v:
                cap = int(v)
                break
    except Exception:
        cap = None
    if cap is not None and cap >= 100 * 1024 * 1024:
        # v5e / v6e: 128 MiB physical VMEM -> push tiles toward the HBM roofline.
        return 64 * 1024 * 1024, 100 * 1024 * 1024
    # v7x (64 MiB per TensorCore) or unknown hardware: stay conservative so
    # double-buffering survives.
    return 28 * 1024 * 1024, 48 * 1024 * 1024


def _pick_tile(n, c, hw, itemsize, budget_bytes):
    """Largest lane tile (multiple of 128) whose full footprint fits the budget."""
    hw_lanes = pl.cdiv(hw, _LANE) * _LANE
    # Per lane-column of tile width:
    #   double-buffered input DMA block : 2 * N*C     * itemsize
    #   double-buffered output DMA block: 2 * N*(C+1) * itemsize
    #   in-kernel f32 live set (one (C,) slice + mean + squared-diff accum)
    per_lane = (2 * n * c + 2 * n * (c + 1)) * itemsize + 3 * 4 * c
    tile = (budget_bytes // per_lane) // _LANE * _LANE
    tile = max(_LANE, tile)
    tile = min(tile, hw_lanes)
    # Keep >= 2 grid steps when possible: both v7x TensorCores get work and the
    # DMA pipeline can overlap compute with prefetch/writeback.
    if tile >= hw_lanes and hw_lanes > _LANE:
        tile = max(_LANE, pl.cdiv(pl.cdiv(hw_lanes, 2), _LANE) * _LANE)
    return tile


def minibatch_stddev(x):
    """MinibatchStdDev(averaging='all'): (N, C, H, W) -> (N, C+1, H, W)."""
    n, c, h, w = x.shape
    hw = h * w
    itemsize = jnp.dtype(x.dtype).itemsize

    budget, vmem_limit = _vmem_budgets()
    tile = _pick_tile(n, c, hw, itemsize, budget)
    grid = pl.cdiv(hw, tile)

    x_flat = x.reshape(n, c, hw)                    # free (contiguous) reshape

    out_flat = pl.pallas_call(
        _minibatch_stddev_kernel,
        out_shape=jax.ShapeDtypeStruct((n, c + 1, hw), x.dtype),
        grid_spec=pltpu.PrefetchScalarGridSpec(
            num_scalar_prefetch=0,
            grid=(grid,),
            in_specs=[pl.BlockSpec((n, c, tile), lambda i: (0, 0, i))],
            out_specs=pl.BlockSpec((n, c + 1, tile), lambda i: (0, 0, i)),
        ),
        compiler_params=pltpu.CompilerParams(
            dimension_semantics=("parallel",),      # megacore-shard the pixel axis
            vmem_limit_bytes=vmem_limit,
        ),
        cost_estimate=pl.CostEstimate(
            flops=int(5 * n * c * hw + 2 * c * hw),
            transcendentals=int(c * hw),
            bytes_accessed=int((n * c + n * (c + 1)) * hw * itemsize),
        ),
    )(x_flat)

    return out_flat.reshape(n, c + 1, h, w)


def _reference(x):
    mean_b = jnp.mean(x, axis=0, keepdims=True)
    std_b = jnp.sqrt(jnp.mean((x - mean_b) ** 2, axis=0, keepdims=True) + _EPS)
    vals = jnp.mean(std_b, axis=1, keepdims=True)            # (1, 1, H, W)
    vals = jnp.broadcast_to(vals, (x.shape[0], 1, x.shape[2], x.shape[3]))
    return jnp.concatenate([x, vals], axis=1)


if __name__ == "__main__":
    key = jax.random.PRNGKey(0)
    N, C, H, W = 2, 4, 16, 16
    # Non-zero mean + scale to exercise the two-pass variance numerics.
    x = 1.5 * jax.random.normal(key, (N, C, H, W), dtype=jnp.float32) + 10.0

    out = jax.block_until_ready(minibatch_stddev(x))

    ref = _reference(x)
    assert out.shape == (N, C + 1, H, W)
    assert jnp.allclose(out, ref, atol=1e-5, rtol=1e-5)

    print("KERNEL_OK")
</pallas_src>

<mosaic_0001>
module attributes {stable_mosaic.version = 11 : i64} {
  func.func @_minibatch_stddev_kernel(%arg0: i32, %arg1: memref<2x4x128xf32, #tpu.memory_space<vmem>>, %arg2: memref<2x5x128xf32, #tpu.memory_space<vmem>>) attributes {dimension_semantics = [#tpu.dimension_semantics<parallel>], iteration_bounds = array<i64: 2>, scalar_prefetch = 0 : i64, scratch_operands = 0 : i64, tpu.core_type = #tpu.core_type<tc>, window_params = [{transform_indices = @transform_0, window_bounds = array<i64: 2, 4, 128>}, {transform_indices = @transform_1, window_bounds = array<i64: 2, 5, 128>}]} {
    %cst = arith.constant 0.000000e+00 : f32
    %0 = vector.broadcast %cst : f32 to vector<4x128xf32>
    %c0_i32 = arith.constant 0 : i32
    %1 = arith.index_cast %c0_i32 : i32 to index
    %c0 = arith.constant 0 : index
    %c0_0 = arith.constant 0 : index
    %2 = vector.load %arg1[%1, %c0, %c0_0] : memref<2x4x128xf32, #tpu.memory_space<vmem>>, vector<1x4x128xf32>
    %3 = vector.shape_cast %2 : vector<1x4x128xf32> to vector<4x128xf32>
    %4 = arith.index_cast %c0_i32 : i32 to index
    %c0_1 = arith.constant 0 : index
    %c0_2 = arith.constant 0 : index
    %5 = vector.load %arg2[%4, %c0_1, %c0_2] : memref<2x5x128xf32, #tpu.memory_space<vmem>>, vector<1x4x128xf32>
    %6 = vector.shape_cast %5 : vector<1x4x128xf32> to vector<4x128xf32>
    %7 = vector.shape_cast %3 : vector<4x128xf32> to vector<1x4x128xf32>
    tpu.vector_store %arg2[%4, %c0_1, %c0_2], %7 {strides = array<i32>} : memref<2x5x128xf32, #tpu.memory_space<vmem>>, vector<1x4x128xf32>,
    %8 = arith.addf %0, %3 : vector<4x128xf32>
    %c1_i32 = arith.constant 1 : i32
    %9 = arith.index_cast %c1_i32 : i32 to index
    %c0_3 = arith.constant 0 : index
    %c0_4 = arith.constant 0 : index
    %10 = vector.load %arg1[%9, %c0_3, %c0_4] : memref<2x4x128xf32, #tpu.memory_space<vmem>>, vector<1x4x128xf32>
    %11 = vector.shape_cast %10 : vector<1x4x128xf32> to vector<4x128xf32>
    %12 = arith.index_cast %c1_i32 : i32 to index
    %c0_5 = arith.constant 0 : index
    %c0_6 = arith.constant 0 : index
    %13 = vector.load %arg2[%12, %c0_5, %c0_6] : memref<2x5x128xf32, #tpu.memory_space<vmem>>, vector<1x4x128xf32>
    %14 = vector.shape_cast %13 : vector<1x4x128xf32> to vector<4x128xf32>
    %15 = vector.shape_cast %11 : vector<4x128xf32> to vector<1x4x128xf32>
    tpu.vector_store %arg2[%12, %c0_5, %c0_6], %15 {strides = array<i32>} : memref<2x5x128xf32, #tpu.memory_space<vmem>>, vector<1x4x128xf32>,
    %16 = arith.addf %8, %11 : vector<4x128xf32>
    %c2_i32 = arith.constant 2 : i32
    %cst_7 = arith.constant 5.000000e-01 : f32
    %17 = vector.broadcast %cst_7 : f32 to vector<4x128xf32>
    %18 = arith.mulf %16, %17 : vector<4x128xf32>
    %cst_8 = arith.constant 0.000000e+00 : f32
    %19 = vector.broadcast %cst_8 : f32 to vector<4x128xf32>
    %c0_i32_9 = arith.constant 0 : i32
    %20 = arith.index_cast %c0_i32_9 : i32 to index
    %c0_10 = arith.constant 0 : index
    %c0_11 = arith.constant 0 : index
    %21 = vector.load %arg1[%20, %c0_10, %c0_11] : memref<2x4x128xf32, #tpu.memory_space<vmem>>, vector<1x4x128xf32>
    %22 = vector.shape_cast %21 : vector<1x4x128xf32> to vector<4x128xf32>
    %23 = arith.subf %22, %18 : vector<4x128xf32>
    %24 = arith.mulf %23, %23 : vector<4x128xf32>
    %25 = arith.addf %19, %24 : vector<4x128xf32>
    %c1_i32_12 = arith.constant 1 : i32
    %26 = arith.index_cast %c1_i32_12 : i32 to index
    %c0_13 = arith.constant 0 : index
    %c0_14 = arith.constant 0 : index
    %27 = vector.load %arg1[%26, %c0_13, %c0_14] : memref<2x4x128xf32, #tpu.memory_space<vmem>>, vector<1x4x128xf32>
    %28 = vector.shape_cast %27 : vector<1x4x128xf32> to vector<4x128xf32>
    %29 = arith.subf %28, %18 : vector<4x128xf32>
    %30 = arith.mulf %29, %29 : vector<4x128xf32>
    %31 = arith.addf %25, %30 : vector<4x128xf32>
    %c2_i32_15 = arith.constant 2 : i32
    %cst_16 = arith.constant 5.000000e-01 : f32
    %32 = vector.broadcast %cst_16 : f32 to vector<4x128xf32>
    %33 = arith.mulf %31, %32 : vector<4x128xf32>
    %cst_17 = arith.constant 9.99999993E-9 : f32
    %34 = vector.broadcast %cst_17 : f32 to vector<4x128xf32>
    %35 = arith.addf %33, %34 : vector<4x128xf32>
    %36 = math.sqrt %35 : vector<4x128xf32>
    %cst_18 = arith.constant dense<0.000000e+00> : vector<128xf32>
    %37 = vector.multi_reduction <add>, %36, %cst_18 [0] : vector<4x128xf32> to vector<128xf32>
    %cst_19 = arith.constant 4.000000e+00 : f32
    %38 = vector.broadcast %cst_19 : f32 to vector<128xf32>
    %39 = arith.divf %37, %38 : vector<128xf32>
    %40 = vector.shape_cast %39 : vector<128xf32> to vector<1x128xf32>
    %c0_i32_20 = arith.constant 0 : i32
    %41 = arith.index_cast %c0_i32_20 : i32 to index
    %c4 = arith.constant 4 : index
    %c0_21 = arith.constant 0 : index
    %42 = vector.load %arg2[%41, %c4, %c0_21] : memref<2x5x128xf32, #tpu.memory_space<vmem>>, vector<1x1x128xf32>
    %43 = vector.shape_cast %42 : vector<1x1x128xf32> to vector<1x128xf32>
    %44 = vector.shape_cast %40 : vector<1x128xf32> to vector<1x1x128xf32>
    tpu.vector_store %arg2[%41, %c4, %c0_21], %44 {strides = array<i32>} : memref<2x5x128xf32, #tpu.memory_space<vmem>>, vector<1x1x128xf32>,
    %c1_i32_22 = arith.constant 1 : i32
    %45 = arith.index_cast %c1_i32_22 : i32 to index
    %c4_23 = arith.constant 4 : index
    %c0_24 = arith.constant 0 : index
    %46 = vector.load %arg2[%45, %c4_23, %c0_24] : memref<2x5x128xf32, #tpu.memory_space<vmem>>, vector<1x1x128xf32>
    %47 = vector.shape_cast %46 : vector<1x1x128xf32> to vector<1x128xf32>
    %48 = vector.shape_cast %40 : vector<1x128xf32> to vector<1x1x128xf32>
    tpu.vector_store %arg2[%45, %c4_23, %c0_24], %48 {strides = array<i32>} : memref<2x5x128xf32, #tpu.memory_space<vmem>>, vector<1x1x128xf32>,
    %c2_i32_25 = arith.constant 2 : i32
    return
  }
  func.func @transform_0(%arg0: i32) -> (i32, i32, i32) {
    %c0_i32 = arith.constant 0 : i32
    %c0_i32_0 = arith.constant 0 : i32
    %c0_i32_1 = arith.constant 0 : i32
    return %c0_i32, %c0_i32_0, %arg0 : i32, i32, i32
  }
  func.func @transform_1(%arg0: i32) -> (i32, i32, i32) {
    %c0_i32 = arith.constant 0 : i32
    %c0_i32_0 = arith.constant 0 : i32
    %c0_i32_1 = arith.constant 0 : i32
    return %c0_i32, %c0_i32_0, %arg0 : i32, i32, i32
  }
}

</mosaic_0001>

<llo_original>
// kernel: tpu_custom_call.1
$region0: #{tpu_custom_call.1}
  #allocation0 [shape = 'u32[]', space=smem, size = 0x4, offset = 0x4, fixed_abs, tag = 'smem constant byte address 0x4 - core index']
  #allocation1 [shape = 'u32[72,128]{1,0:T(1,128)}', space=vmem, size = 0x9000, scoped, tag = 'internal scratch']
  %s0 = inlined_call_operand.hbm [shape: f32[2,4,256], index: 0, kind: input, shape index: {}]
  %s1 = inlined_call_operand.vmem [shape: f32[2,5,256], index: 1, kind: output, shape index: {}]
  %s2 = sld [smem:[#allocation0]]
  $region75: #{tpu_custom_call.1} parent=0
    _
  %s4 = ssub.s32 1, %s2
  %s5 = scalar_select 0, %s4, %s2
  $region1: #{tpu_custom_call.1} parent=0
    #allocation2 [shape = 'u8[8192]{0}', space=vmem, size = 0x2000, scoped, tag = 'input window, operand 0']
    #allocation3 [shape = 's32[2]{0}', space=sflag, size = 0x8, scoped, tag = 'scoped memory for tpu_custom_call.1']
    #allocation4 [shape = 'u8[16384]{0}', space=vmem, size = 0x4000, scoped, tag = 'output window, operand 0']
    %6 = vsyncpa [#allocation3], 0
    %s7 = scalar_lea.sflag [#allocation3], 1
    %8 = vsyncpa %s7, 0
    loop: start=0, step=1, limit=4
    $region2: #{tpu_custom_call.1} parent=1 // loop_pre_header
      _
    $region3: #{tpu_custom_call.1} parent=1 // loop_header
      %s10 = sphi 0, %s14
      %p11 = scmp.ge.s32.totalorder %s10, 4
      %s20 = sphi 0, %s22
      %s23 = sphi 0, %s20
      %s24 = sphi 0, %s23
      %s40 = sphi 0, %s24
      %s46 = sphi 0, %s48
      %s49 = sphi 0, %s46
      %s50 = sphi 0, %s49
      %s66 = sphi 0, %s50
    $region4: #{tpu_custom_call.1} parent=1 // loop_header_branch
      %13 = sbr.rel (%p11) target = $region8
    $region5: #{tpu_custom_call.1} parent=1 // loop_body
      %s15 = ssub.s32 %s10, 1
      %s16 = ssub.s32 %s10, 2
      %s17 = sadd.s32 %s10, 1
      %s18 = ssub.s32 %s10, %s17
      %p19 = scmp.eq.s32.totalorder %s18, 0
      %s21 = sadd.s32 %s20, 1
      %s22 = scalar_select %p19, %s20, %s21
      %p25 = pneg %p19
      %p26 = scmp.eq.s32.totalorder %s10, 1
      %p27 = por %p25, %p26
      %p28 = scmp.ne.s32.totalorder %s20, %s23
      %p29 = scmp.eq.s32.totalorder %s10, 0
      %p30 = por %p28, %p29
      %p31 = scmp.ne.s32.totalorder %s20, %s23
      %p32 = scmp.eq.s32.totalorder %s15, 1
      %p33 = por %p31, %p32
      %p34 = scmp.ne.s32.totalorder %s23, %s24
      %p35 = scmp.eq.s32.totalorder %s15, 0
      %p36 = por %p34, %p35
      %p37 = scmp.ne.s32.totalorder %s23, %s24
      %p38 = scmp.eq.s32.totalorder %s16, 1
      %p39 = por %p37, %p38
      %p41 = scmp.ne.s32.totalorder %s24, %s40
      %p42 = scmp.eq.s32.totalorder %s16, 0
      %p43 = por %p41, %p42
      %s44 = ssub.s32 %s10, %s17
      %p45 = scmp.eq.s32.totalorder %s44, 0
      %s47 = sadd.s32 %s46, 1
      %s48 = scalar_select %p45, %s46, %s47
      %p51 = pneg %p45
      %p52 = scmp.eq.s32.totalorder %s10, 1
      %p53 = por %p51, %p52
      %p54 = scmp.ne.s32.totalorder %s46, %s49
      %p55 = scmp.eq.s32.totalorder %s10, 0
      %p56 = por %p54, %p55
      %p57 = scmp.ne.s32.totalorder %s46, %s49
      %p58 = scmp.eq.s32.totalorder %s15, 1
      %p59 = por %p57, %p58
      %p60 = scmp.ne.s32.totalorder %s49, %s50
      %p61 = scmp.eq.s32.totalorder %s15, 0
      %p62 = por %p60, %p61
      %p63 = scmp.ne.s32.totalorder %s49, %s50
      %p64 = scmp.eq.s32.totalorder %s16, 1
      %p65 = por %p63, %p64
      %p67 = scmp.ne.s32.totalorder %s50, %s66
      %p68 = scmp.eq.s32.totalorder %s16, 0
      %p69 = por %p67, %p68
      %p70 = scmp.le.s32.totalorder 1, %s10
      %p71 = scmp.lt.s32.totalorder %s10, 3
      %p72 = pnand %p70, %p71
      %p73 = pneg %p72
      // Predicated region
      $region9: #{tpu_custom_call.1} parent=5 // pred_check
        _
      $region10: #{tpu_custom_call.1} parent=5 // pred_check_branch
        %75 = sbr.rel (%p72) target = $region12
      $region11: #{tpu_custom_call.1} parent=5 // pred_region
        %s76 = ssub.s32 %s10, 1
      $region12: #{tpu_custom_call.1} parent=5 // pred_fallthru
        _
      %p77 = scmp.lt.s32.totalorder %s10, 2
      // Predicated region
      $region13: #{tpu_custom_call.1} parent=5 // pred_check
        %p78 = pneg %p77
      $region14: #{tpu_custom_call.1} parent=5 // pred_check_branch
        %80 = sbr.rel (%p78) target = $region16
      $region15: #{tpu_custom_call.1} parent=5 // pred_region
        // Predicated region
        $region17: #{tpu_custom_call.1} parent=15 // pred_check
          %p81 = pneg %p30
        $region18: #{tpu_custom_call.1} parent=15 // pred_check_branch
          %83 = sbr.rel (%p81) target = $region20
        $region19: #{tpu_custom_call.1} parent=15 // pred_region
          %s84 = sand.u32 %s20, 1
          %s85 = scalar_lea.sflag [#allocation3], %s84
          %s86 = sand.u32 %s20, 1
          %s87 = smul.addr %s86, 8
          %s88 = scalar_lea.vmem [#allocation2], %s87
          %90 = vsyncadd %s85, 0
          %s91 = smul.addr %s10, 4
          %s92 = scalar_lea.hbm %s0, %s91
          %s93 = sshll.u32 %s92, 4
          %s94 = int_to_ptr.hbm [resolvable:$true] %s93
          %s95 = sshll.u32 %s88, 4
          %s96 = int_to_ptr.vmem [resolvable:$true] %s95
          %101 = dma.hbm_to_vmem [thread:$0]  %s94, 128, %s96, %s85, 128, 64, 4
        $region20: #{tpu_custom_call.1} parent=15 // pred_fallthru
          _
      $region16: #{tpu_custom_call.1} parent=5 // pred_fallthru
        _
      %p102 = scmp.le.s32.totalorder 1, %s10
      %p103 = scmp.lt.s32.totalorder %s10, 3
      %p104 = pnand %p102, %p103
      %p105 = pneg %p104
      // Predicated region
      $region21: #{tpu_custom_call.1} parent=5 // pred_check
        _
      $region22: #{tpu_custom_call.1} parent=5 // pred_check_branch
        %107 = sbr.rel (%p104) target = $region24
      $region23: #{tpu_custom_call.1} parent=5 // pred_region
        %s108 = ssub.s32 %s10, 1
        %s109 = sand.u32 %s23, 1
        %s110 = scalar_lea.sflag [#allocation3], %s109
        %s111 = sand.u32 %s23, 1
        %s112 = smul.addr %s111, 8
        %s113 = scalar_lea.vmem [#allocation2], %s112
        // Predicated region
        $region25: #{tpu_custom_call.1} parent=23 // pred_check
          %p114 = pneg %p36
        $region26: #{tpu_custom_call.1} parent=23 // pred_check_branch
          %116 = sbr.rel (%p114) target = $region28
        $region27: #{tpu_custom_call.1} parent=23 // pred_region
          %118 = dma.done %s110, 128
        $region28: #{tpu_custom_call.1} parent=23 // pred_fallthru
          _
        %s119 = sand.u32 %s23, 1
        %s120 = scalar_lea.sflag [#allocation3], %s119
        %s121 = sand.u32 %s23, 1
        %s122 = smul.addr %s121, 8
        %s123 = scalar_lea.vmem [#allocation2], %s122
        %p124 = pneg %p36
        %p125 = pneg %p33
        %p126 = pneg %p62
        %p127 = pneg %p59
        %s128 = sand.u32 %s49, 1
        %s129 = sand.u32 %s49, 1
        %s130 = smul.addr %s129, 16
        %s131 = scalar_lea.vmem [#allocation4], %s130
        %v132 = vld [vmem:[%s113] sm:$0xf]
        %133 = vst [vmem:[%s131] sm:$0xf] %v132
        %v134 = vadd.f32 %v132, 0.0
        %s135 = scalar_lea.vmem %s113, 4 [#allocation2]
        %v136 = vld [vmem:[%s135] sm:$0xf]
        %s137 = scalar_lea.vmem %s131, 8 [#allocation4]
        %138 = vst [vmem:[%s137] sm:$0xf] %v136
        %v139 = vadd.f32 %v134, %v136
        %v140 = vmul.f32 %v139, 0.5
        %v141 = vld [vmem:[%s113] sm:$0xf]
        %v142 = vsub.f32 %v141, %v140
        %v143 = vmul.f32 %v142, %v142
        %v144 = vadd.f32 %v143, 0.0
        %v145 = vld [vmem:[%s135] sm:$0xf]
        %v146 = vsub.f32 %v145, %v140
        %v147 = vmul.f32 %v146, %v146
        %v148 = vadd.f32 %v144, %v147
        %v149 = vmul.f32 %v148, 0.5
        %v150 = vadd.f32 %v149, 1e-08
        %v151 = vrsqrt.pop %v150
        %v152 = vmul.f32 %v151, %v150
        %v153 = vmul.f32 %v152, %v151
        %v154 = vmul.f32 0.5, %v153
        %v155 = vsub.f32 1.5, %v154
        %v156 = vmul.f32 %v151, %v155
        %v157 = vmul.f32 %v150, %v156
        %vm158 = vcmp.eq.f32.partialorder %v150, inf
        %v159 = vsel %vm158, %v150, %v157
        %vm160 = vcmp.eq.f32.partialorder %v150, 0.0
        %v161 = vand.u32 %v150, 2147483648
        %v162 = vsel %vm160, %v161, %v159
        %vm163 = vcmask 1043456
        %v164 = vsel %vm163, %v162, 0.0
        %v165 = vrot.slane %v164, 4
        %v166 = vadd.f32 %v164, %v165
        %v167 = vrot.slane %v166, 2
        %v168 = vadd.f32 %v166, %v167
        %v169 = vrot.slane %v168, 1
        %v170 = vadd.f32 %v168, %v169
        %v171 = vrcp.pop 4.0
        %v172 = vmul.f32 4.0, %v171
        %v173 = vsub.f32 1.0, %v172
        %v174 = vmul.f32 %v171, %v173
        %v175 = vadd.f32 %v171, %v174
        %vm176 = vweird.f32 %v171
        %v177 = vsel %vm176, %v171, %v175
        %v178 = vmul.f32 %v170, %v177
        %179 = vst [vmem:[%s131 + $0x4] sm:$0x1] %v178
        %180 = vst [vmem:[%s137 + $0x4] sm:$0x1] %v178
        %s181 = sand.u32 %s49, 1
        %s182 = sand.u32 %s49, 1
        %s183 = smul.addr %s182, 16
        %s184 = scalar_lea.vmem [#allocation4], %s183
        // Predicated region
        $region29: #{tpu_custom_call.1} parent=23 // pred_check
          %p185 = pneg %p59
        $region30: #{tpu_custom_call.1} parent=23 // pred_check_branch
          %187 = sbr.rel (%p185) target = $region32
        $region31: #{tpu_custom_call.1} parent=23 // pred_region
          %s188 = smul.addr %s15, 8
          %s189 = scalar_lea.vmem %s1, %s188
          // Predicated region
          $region33: #{tpu_custom_call.1} parent=31 // pred_check
            _
          $region34: #{tpu_custom_call.1} parent=31 // pred_check_branch
            %191 = sbr.rel (0) target = $region36
          $region35: #{tpu_custom_call.1} parent=31 // pred_region
            // Predicated region
            $region37: #{tpu_custom_call.1} parent=35 // pred_check
              _
            $region38: #{tpu_custom_call.1} parent=35 // pred_check_branch
              %193 = sbr.rel (0) target = $region40
            $region39: #{tpu_custom_call.1} parent=35 // pred_region
              // Predicated region
              $region52: #{tpu_custom_call.1} parent=39 // pred_check
                _
              $region53: #{tpu_custom_call.1} parent=39 // pred_check_branch
                %211 = sbr.rel (0) target = $region55
              $region54: #{tpu_custom_call.1} parent=39 // pred_region
                loop: start=0, step=1, limit=1
                $region56: #{tpu_custom_call.1} parent=54 // loop_pre_header
                  _
                $region57: #{tpu_custom_call.1} parent=54 // loop_header
                  %s213 = sphi 0, %s217
                  %p214 = scmp.ge.s32.totalorder %s213, 1
                  %s218 = sphi %s184, %s184
                  %s219 = sphi %s189, %s189
                $region58: #{tpu_custom_call.1} parent=54 // loop_header_branch
                  %216 = sbr.rel (%p214) target = $region62
                $region59: #{tpu_custom_call.1} parent=54 // loop_body
                  %v220 = vld [vmem:[%s218] sm:$0xff]
                  %221 = vst [vmem:[%s219] sm:$0xff] %v220
                  %v222 = vld [vmem:[%s218 + $0x8] sm:$0xff]
                  %223 = vst [vmem:[%s219 + $0x10] sm:$0xff] %v222
                $region60: #{tpu_custom_call.1} parent=54 // loop_footer
                  %s217 = sadd.s32 1, %s213
                $region61: #{tpu_custom_call.1} parent=54 // loop_footer_branch
                  %212 = sbr.rel target = $region57
                $region62: #{tpu_custom_call.1} parent=54 // loop_exit
                  _
              $region55: #{tpu_custom_call.1} parent=39 // pred_fallthru
                _
              // Predicated region
              $region63: #{tpu_custom_call.1} parent=39 // pred_check
                _
              $region64: #{tpu_custom_call.1} parent=39 // pred_check_branch
                %225 = sbr.rel target = $region66
              $region65: #{tpu_custom_call.1} parent=39 // pred_region
                _
              $region66: #{tpu_custom_call.1} parent=39 // pred_fallthru
                _
            $region40: #{tpu_custom_call.1} parent=35 // pred_fallthru
              _
            // Predicated region
            $region41: #{tpu_custom_call.1} parent=35 // pred_check
              _
            $region42: #{tpu_custom_call.1} parent=35 // pred_check_branch
              %195 = sbr.rel target = $region44
            $region43: #{tpu_custom_call.1} parent=35 // pred_region
              %s197 = ssub.s32 256, 1
              loop: start=0, step=1, limit=1
              $region45: #{tpu_custom_call.1} parent=43 // loop_pre_header
                _
              $region46: #{tpu_custom_call.1} parent=43 // loop_header
                %s199 = sphi 0, %s203
                %p200 = scmp.ge.s32.totalorder %s199, 1
                %s204 = sphi %s184, %s184
                %s205 = sphi %s189, %s189
              $region47: #{tpu_custom_call.1} parent=43 // loop_header_branch
                %202 = sbr.rel (%p200) target = $region51
              $region48: #{tpu_custom_call.1} parent=43 // loop_body
                %v206 = vld [vmem:[%s204] sm:%s197]
                %207 = vst [vmem:[%s205] sm:%s197] %v206
                %v208 = vld [vmem:[%s204 + $0x8] sm:%s197]
                %209 = vst [vmem:[%s205 + $0x10] sm:%s197] %v208
              $region49: #{tpu_custom_call.1} parent=43 // loop_footer
                %s203 = sadd.s32 1, %s199
              $region50: #{tpu_custom_call.1} parent=43 // loop_footer_branch
                %198 = sbr.rel target = $region46
              $region51: #{tpu_custom_call.1} parent=43 // loop_exit
                _
            $region44: #{tpu_custom_call.1} parent=35 // pred_fallthru
              _
          $region36: #{tpu_custom_call.1} parent=31 // pred_fallthru
            _
          %226 = vnop
        $region32: #{tpu_custom_call.1} parent=23 // pred_fallthru
          _
      $region24: #{tpu_custom_call.1} parent=5 // pred_fallthru
        _
      %p227 = scmp.le.s32.totalorder 2, %s10
      // Predicated region
      $region67: #{tpu_custom_call.1} parent=5 // pred_check
        %p228 = pneg %p227
      $region68: #{tpu_custom_call.1} parent=5 // pred_check_branch
        %230 = sbr.rel (%p228) target = $region70
      $region69: #{tpu_custom_call.1} parent=5 // pred_region
        %s231 = ssub.s32 %s10, 2
        // Predicated region
        $region71: #{tpu_custom_call.1} parent=69 // pred_check
          %p232 = pneg %p65
        $region72: #{tpu_custom_call.1} parent=69 // pred_check_branch
          %234 = sbr.rel (%p232) target = $region74
        $region73: #{tpu_custom_call.1} parent=69 // pred_region
          %s235 = sand.u32 %s50, 1
          %s236 = sand.u32 %s50, 1
          %s237 = smul.addr %s236, 16
          %s238 = scalar_lea.vmem [#allocation4], %s237
        $region74: #{tpu_custom_call.1} parent=69 // pred_fallthru
          _
      $region70: #{tpu_custom_call.1} parent=5 // pred_fallthru
        _
    $region6: #{tpu_custom_call.1} parent=1 // loop_footer
      %s14 = sadd.s32 1, %s10
    $region7: #{tpu_custom_call.1} parent=1 // loop_footer_branch
      %9 = sbr.rel target = $region3
    $region8: #{tpu_custom_call.1} parent=1 // loop_exit
      _
    %239 = vsyncpa [#allocation3], 1
    %s240 = scalar_lea.sflag [#allocation3], 1
    %241 = vsyncpa %s240, 1

</llo_original>
